<compile_context>
chip_gen: v7x
topology: tpu7x:2x2x1
jax: 0.10.0
libtpu: 0.0.40
codegen_flags: <defaults>
</compile_context>

<pallas_src>
import jax
import jax.numpy as jnp
from jax.experimental import pallas as pl
from jax.experimental.pallas import tpu as pltpu


def _round_up(n, m):
    return ((n + m - 1) // m) * m


def _linreg_kernel(w_ref, x_ref, o_ref):
    # w_ref: (2,) in SMEM, x_ref: (2, TB) in VMEM, o_ref: (1, TB) in VMEM.
    # Pure VPU: two scalar-broadcast multiplies + one add per lane-dense block.
    w0 = w_ref[0]
    w1 = w_ref[1]
    o_ref[...] = w0 * x_ref[0:1, :] + w1 * x_ref[1:2, :]


def linreg_forward(x, w, *, block_n=1024):
    """y = x @ w as a Pallas TPU kernel.

    x: (N, 2) float32, w: (2, 1) float32 -> (N, 1) float32.
    Internally computed lane-dense: x is streamed as (2, N) blocks of width
    TB (multiple of 128), output produced as (1, N) and transposed back.
    """
    N, F = x.shape
    assert F == 2 and w.shape == (F, 1)

    x = x.astype(jnp.float32)
    w_flat = jnp.reshape(w, (-1,)).astype(jnp.float32)  # (2,) scalars -> SMEM

    # Lane-dense layout: batch on the 128-lane axis.
    xT = jnp.transpose(x)  # (2, N)

    # Block size: multiple of 128 lanes, capped at block_n; pad N if needed.
    TB = min(block_n, _round_up(N, 128))
    Np = _round_up(N, TB)
    if Np != N:
        xT = jnp.pad(xT, ((0, 0), (0, Np - N)))
    grid = (Np // TB,)

    yT = pl.pallas_call(
        _linreg_kernel,
        out_shape=jax.ShapeDtypeStruct((1, Np), jnp.float32),
        grid=grid,
        in_specs=[
            # w: whole (2,) array in SMEM, shared by every grid step.
            pl.BlockSpec(memory_space=pltpu.SMEM),
            # x: lane-dense (2, TB) block per grid step.
            pl.BlockSpec((2, TB), lambda i: (0, i)),
        ],
        # y: lane-dense (1, TB) block -> unmasked full-lane stores.
        out_specs=pl.BlockSpec((1, TB), lambda i: (0, i)),
        compiler_params=pltpu.CompilerParams(
            dimension_semantics=("parallel",),
        ),
    )(w_flat, xT)

    # Back to the PyTorch layout: (N, 1).
    return jnp.transpose(yT[:, :N])


if __name__ == "__main__":
    key = jax.random.PRNGKey(0)
    kx, kw = jax.random.split(key)

    # Deterministic parameter init mirroring torch.rand(2, 1) (uniform [0, 1)).
    w = jax.random.uniform(kw, (2, 1), dtype=jnp.float32)

    # Example input: batch of 256 samples with 2 features (x @ w -> (256, 1)).
    N = 256
    x = jax.random.normal(kx, (N, 2), dtype=jnp.float32)

    y = linreg_forward(x, w)
    jax.block_until_ready(y)

    # Correctness check against plain JAX reference.
    y_ref = x @ w
    assert y.shape == (N, 1)
    assert jnp.allclose(y, y_ref, atol=1e-5), "mismatch vs reference"

    print("KERNEL_OK")
</pallas_src>

<mosaic_0001>
module attributes {stable_mosaic.version = 11 : i64} {
  func.func @_linreg_kernel(%arg0: i32, %arg1: memref<2xf32, #tpu.memory_space<smem>>, %arg2: memref<2x256xf32, #tpu.memory_space<vmem>>, %arg3: memref<1x256xf32, #tpu.memory_space<vmem>>) attributes {dimension_semantics = [#tpu.dimension_semantics<parallel>], iteration_bounds = array<i64: 1>, scalar_prefetch = 0 : i64, scratch_operands = 0 : i64, tpu.core_type = #tpu.core_type<tc>, window_params = [{transform_indices = @transform_0, window_bounds = array<i64: 2>}, {transform_indices = @transform_1, window_bounds = array<i64: 2, 256>}, {transform_indices = @transform_2, window_bounds = array<i64: 1, 256>}]} {
    %c0 = arith.constant 0 : index
    %0 = memref.load %arg1[%c0] : memref<2xf32, #tpu.memory_space<smem>>
    %c1 = arith.constant 1 : index
    %1 = memref.load %arg1[%c1] : memref<2xf32, #tpu.memory_space<smem>>
    %c0_0 = arith.constant 0 : index
    %c0_1 = arith.constant 0 : index
    %2 = vector.load %arg2[%c0_0, %c0_1] : memref<2x256xf32, #tpu.memory_space<vmem>>, vector<1x256xf32>
    %3 = vector.broadcast %0 : f32 to vector<1x256xf32>
    %4 = arith.mulf %3, %2 : vector<1x256xf32>
    %c1_2 = arith.constant 1 : index
    %c0_3 = arith.constant 0 : index
    %5 = vector.load %arg2[%c1_2, %c0_3] : memref<2x256xf32, #tpu.memory_space<vmem>>, vector<1x256xf32>
    %6 = vector.broadcast %1 : f32 to vector<1x256xf32>
    %7 = arith.mulf %6, %5 : vector<1x256xf32>
    %8 = arith.addf %4, %7 : vector<1x256xf32>
    %c0_4 = arith.constant 0 : index
    %c0_5 = arith.constant 0 : index
    %9 = vector.load %arg3[%c0_4, %c0_5] : memref<1x256xf32, #tpu.memory_space<vmem>>, vector<1x256xf32>
    tpu.vector_store %arg3[%c0_4, %c0_5], %8 {strides = array<i32>} : memref<1x256xf32, #tpu.memory_space<vmem>>, vector<1x256xf32>,
    return
  }
  func.func @transform_0(%arg0: i32) -> i32 {
    %c0_i32 = arith.constant 0 : i32
    %c0_i32_0 = arith.constant 0 : i32
    return %c0_i32 : i32
  }
  func.func @transform_1(%arg0: i32) -> (i32, i32) {
    %c0_i32 = arith.constant 0 : i32
    %c0_i32_0 = arith.constant 0 : i32
    return %c0_i32, %arg0 : i32, i32
  }
  func.func @transform_2(%arg0: i32) -> (i32, i32) {
    %c0_i32 = arith.constant 0 : i32
    %c0_i32_0 = arith.constant 0 : i32
    return %c0_i32, %arg0 : i32, i32
  }
}

</mosaic_0001>

<llo_original>
// kernel: tpu_custom_call.1
$region0: #{tpu_custom_call.1}
  #allocation0 [shape = 'u32[]', space=smem, size = 0x4, offset = 0x4, fixed_abs, tag = 'smem constant byte address 0x4 - core index']
  #allocation1 [shape = 'u32[144,128]{1,0:T(1,128)}', space=vmem, size = 0x12000, scoped, tag = 'internal scratch']
  %s0 = inlined_call_operand.hbm [shape: f32[2], index: 0, kind: input, shape index: {}]
  %s1 = inlined_call_operand.hbm [shape: f32[2,256], index: 1, kind: input, shape index: {}]
  %s2 = inlined_call_operand.hbm [shape: f32[1,256], index: 2, kind: output, shape index: {}]
  %s3 = sld [smem:[#allocation0]]
  $region26: #{tpu_custom_call.1} parent=0
    _
  %s5 = ssub.s32 1, %s3
  %s6 = scalar_select 0, %s5, %s3
  $region1: #{tpu_custom_call.1} parent=0
    #allocation2 [shape = 'u8[512]{0}', space=smem, size = 0x200, scoped, tag = 'input window, operand 0, single buffered']
    #allocation3 [shape = 's32[1]{0}', space=sflag, size = 0x4, scoped, tag = 'scoped memory for tpu_custom_call.1']
    #allocation4 [shape = 's32[1]{0}', space=sflag, size = 0x4, scoped, tag = 'scoped memory for tpu_custom_call.1']
    #allocation5 [shape = 's32[1]{0}', space=sflag, size = 0x4, scoped, tag = 'scoped memory for tpu_custom_call.1']
    #allocation6 [shape = 'u8[2048]{0}', space=vmem, size = 0x800, scoped, tag = 'input window, operand 1, single buffered']
    #allocation7 [shape = 'u8[1024]{0}', space=vmem, size = 0x400, scoped, tag = 'output window, operand 0, single buffered']
    %7 = vsyncpa [#allocation5], 0
    %8 = vsyncpa [#allocation3], 0
    %9 = vsyncpa [#allocation4], 0
    // Predicated region
    $region2: #{tpu_custom_call.1} parent=1 // pred_check
      _
    $region3: #{tpu_custom_call.1} parent=1 // pred_check_branch
      %11 = sbr.rel (0) target = $region5
    $region4: #{tpu_custom_call.1} parent=1 // pred_region
      %s13 = ssub.s32 16, 16
      %14 = vsyncadd [#allocation5], %s13
      %17 = dma.hbm_to_smem %s0, 16, [#allocation2], [#allocation5]
    $region5: #{tpu_custom_call.1} parent=1 // pred_fallthru
      _
    // Predicated region
    $region6: #{tpu_custom_call.1} parent=1 // pred_check
      _
    $region7: #{tpu_custom_call.1} parent=1 // pred_check_branch
      %19 = sbr.rel (0) target = $region9
    $region8: #{tpu_custom_call.1} parent=1 // pred_region
      %s21 = ssub.s32 64, 64
      %22 = vsyncadd [#allocation3], %s21
      %s24 = sshll.u32 [#allocation6], 4
      %s25 = int_to_ptr.vmem [resolvable:$true] %s24
      %27 = dma.hbm_to_vmem [thread:$0]  %s1, 64, %s25, [#allocation3]
    $region9: #{tpu_custom_call.1} parent=1 // pred_fallthru
      _
    // Predicated region
    $region10: #{tpu_custom_call.1} parent=1 // pred_check
      _
    $region11: #{tpu_custom_call.1} parent=1 // pred_check_branch
      %29 = sbr.rel (0) target = $region13
    $region12: #{tpu_custom_call.1} parent=1 // pred_region
      %30 = dma.done [#allocation5], 16
    $region13: #{tpu_custom_call.1} parent=1 // pred_fallthru
      _
    // Predicated region
    $region14: #{tpu_custom_call.1} parent=1 // pred_check
      _
    $region15: #{tpu_custom_call.1} parent=1 // pred_check_branch
      %32 = sbr.rel (0) target = $region17
    $region16: #{tpu_custom_call.1} parent=1 // pred_region
      %33 = dma.done [#allocation3], 64
    $region17: #{tpu_custom_call.1} parent=1 // pred_fallthru
      _
    %34 = sfence
    %s35 = sld [smem:[#allocation2]]
    %s36 = sld [smem:[#allocation2 + $0x1]]
    %v37 = vld [vmem:[#allocation6] ss:$2 sm:$0x3]
    %v38 = vstv %s35
    %v39 = vmul.f32 %v38, %v37
    %s40 = scalar_lea.vmem [#allocation6], 1
    %v41 = vld [vmem:[%s40] ss:$2 sm:$0x3]
    %v42 = vstv %s36
    %v43 = vmul.f32 %v42, %v41
    %v44 = vadd.f32 %v39, %v43
    %v45 = vlaneseq
    %vm46 = vcmp.ge.s32.totalorder %v45, 0
    %vm47 = vcmp.lt.s32.totalorder %v45, 256
    %vm48 = vmand %vm46, %vm47
    %49 = vst.msk [vmem:[#allocation7] sm:$0x3] %vm48, %v44
    // Predicated region
    $region18: #{tpu_custom_call.1} parent=1 // pred_check
      _
    $region19: #{tpu_custom_call.1} parent=1 // pred_check_branch
      %51 = sbr.rel (0) target = $region21
    $region20: #{tpu_custom_call.1} parent=1 // pred_region
      %s53 = ssub.s32 32, 32
      %54 = vsyncadd [#allocation4], %s53
      %s56 = sshll.u32 [#allocation7], 4
      %s57 = int_to_ptr.vmem [resolvable:$true] %s56
      %59 = dma.vmem_to_hbm [thread:$0]  %s57, 32, %s2, [#allocation4]
    $region21: #{tpu_custom_call.1} parent=1 // pred_fallthru
      _
    // Predicated region
    $region22: #{tpu_custom_call.1} parent=1 // pred_check
      _
    $region23: #{tpu_custom_call.1} parent=1 // pred_check_branch
      %61 = sbr.rel (0) target = $region25
    $region24: #{tpu_custom_call.1} parent=1 // pred_region
      %62 = dma.done [#allocation4], 32
    $region25: #{tpu_custom_call.1} parent=1 // pred_fallthru
      _
    %63 = vsyncpa [#allocation3], 1
    %64 = vsyncpa [#allocation4], 1
    %65 = vsyncpa [#allocation5], 1

</llo_original>
